<compile_context>
chip_gen: v7x
topology: tpu7x:2x2x1
jax: 0.10.0
libtpu: 0.0.40
codegen_flags: <defaults>
</compile_context>

<pallas_src>
import jax
import jax.numpy as jnp
from jax.experimental import pallas as pl
from jax.experimental.pallas import tpu as pltpu


def ffnet_kernel(x_ref, w1_ref, b1_ref, w2_ref, b2_ref, w3_ref, b3_ref, o_ref):
    # x tile: (4, TB) in compute dtype; all VPU math in f32 (v5e has no bf16 VPU).
    x = x_ref[...].astype(jnp.float32)
    w1 = w1_ref[...]                               # (n, 4) f32, VMEM-resident

    # ---- Layer 1: K=4 contraction on the VPU (MXU would be pure pipeline fill)
    h1 = b1_ref[...]                               # (n, 1) broadcasts over lanes
    for k in range(4):
        h1 = h1 + w1[:, k:k + 1] * x[k:k + 1, :]
    h1 = jnp.maximum(h1, 0.0)                      # (n, TB) f32

    # ---- Layer 2: the only MXU matmul (n x n), f32 accumulation -------------
    h2 = jnp.dot(w2_ref[...], h1.astype(w2_ref.dtype),
                 preferred_element_type=jnp.float32)
    h2 = jnp.maximum(h2 + b2_ref[...], 0.0)        # (n, TB) f32

    # ---- Layer 3: (n -> 1) as VPU multiply + sublane (XLU) reduction --------
    y = jnp.sum(w3_ref[...] * h2, axis=0, keepdims=True) + b3_ref[...]  # (1, TB)
    o_ref[...] = y.astype(o_ref.dtype)


def ffnet_forward(x, params, *, block_b=256, compute_dtype=jnp.float32):
    """x: (B, 4) float32. Returns (B, 1) float32, matching the PyTorch module."""
    w1, b1, w2, b2, w3, b3 = params
    B = x.shape[0]
    assert x.shape[1] == 4
    assert block_b % 128 == 0, "batch tile must be lane-dense (multiple of 128)"

    # Pad the batch up to a multiple of the tile and transpose to (4, Bp) so the
    # batch dimension lands on the lane axis (dense DMA bursts, dense stores).
    num_blocks = pl.cdiv(B, block_b)
    Bp = num_blocks * block_b
    xt = jnp.pad(x, ((0, Bp - B), (0, 0))).T.astype(compute_dtype)   # (4, Bp)
    w2c = w2.astype(compute_dtype)     # only the MXU operand changes dtype

    # Resident (weight/bias) blocks: full array, constant block index.
    resident = lambda shape: pl.BlockSpec(shape, lambda i, s=shape: (0,) * len(s))

    out = pl.pallas_call(
        ffnet_kernel,
        out_shape=jax.ShapeDtypeStruct((1, Bp), jnp.float32),
        grid=(num_blocks,),
        in_specs=[
            pl.BlockSpec((4, block_b), lambda i: (0, i)),     # streamed x tiles
            resident(w1.shape), resident(b1.shape),
            resident(w2c.shape), resident(b2.shape),
            resident(w3.shape), resident(b3.shape),
        ],
        out_specs=pl.BlockSpec((1, block_b), lambda i: (0, i)),
        compiler_params=pltpu.CompilerParams(
            dimension_semantics=("parallel",)),
    )(xt, w1, b1, w2c, b2, w3, b3)

    return out[:, :B].T                                       # (B, 1) float32


def init_params(key, n):
    """Deterministic init mimicking nn.Linear's U(-1/sqrt(fan_in), 1/sqrt(fan_in)).

    Layout used by the kernel (features-major):
      w1: (n, 4)  = layer1.weight          b1: (n, 1)
      w2: (n, n)  = layer2.weight          b2: (n, 1)
      w3: (n, 1)  = layer3.weight.T        b3: (1, 1)
    """
    ks = jax.random.split(key, 6)

    def u(k, shape, fan_in):
        bound = 1.0 / float(fan_in) ** 0.5
        return jax.random.uniform(k, shape, jnp.float32, -bound, bound)

    w1 = u(ks[0], (n, 4), 4)
    b1 = u(ks[1], (n, 1), 4)
    w2 = u(ks[2], (n, n), n)
    b2 = u(ks[3], (n, 1), n)
    w3 = u(ks[4], (n, 1), n)
    b3 = u(ks[5], (1, 1), n)
    return w1, b1, w2, b2, w3, b3


def ffnet_reference(x, params):
    w1, b1, w2, b2, w3, b3 = params
    h1 = jnp.maximum(x @ w1.T + b1.T, 0.0)
    h2 = jnp.maximum(h1 @ w2.T + b2.T, 0.0)
    return h2 @ w3 + b3


if __name__ == "__main__":
    key = jax.random.PRNGKey(0)
    k_x, k_p = jax.random.split(key)

    n = 32        # hidden width of FFNet(n)
    batch = 300   # not a multiple of the tile: exercises padding + multi-step grid
    x = jax.random.normal(k_x, (batch, 4), jnp.float32)
    params = init_params(k_p, n)

    y_ref = ffnet_reference(x, params)

    # f32 path: exact match against the reference.
    y = jax.block_until_ready(ffnet_forward(x, params, block_b=128))
    assert y.shape == (batch, 1)
    assert jnp.allclose(y, y_ref, atol=1e-5, rtol=1e-5)

    # bf16-MXU path (v6e/v7x-friendly): half the streamed bytes, f32 accumulate.
    y_bf16 = jax.block_until_ready(
        ffnet_forward(x, params, block_b=256, compute_dtype=jnp.bfloat16))
    assert y_bf16.shape == (batch, 1)
    assert jnp.allclose(y_bf16, y_ref, atol=5e-2, rtol=5e-2)

    print("KERNEL_OK")
</pallas_src>

<mosaic_0001>
module attributes {stable_mosaic.version = 11 : i64} {
  func.func @ffnet_kernel(%arg0: i32, %arg1: memref<4x128xf32, #tpu.memory_space<vmem>>, %arg2: memref<32x4xf32, #tpu.memory_space<vmem>>, %arg3: memref<32x1xf32, #tpu.memory_space<vmem>>, %arg4: memref<32x32xf32, #tpu.memory_space<vmem>>, %arg5: memref<32x1xf32, #tpu.memory_space<vmem>>, %arg6: memref<32x1xf32, #tpu.memory_space<vmem>>, %arg7: memref<1x1xf32, #tpu.memory_space<vmem>>, %arg8: memref<1x128xf32, #tpu.memory_space<vmem>>) attributes {dimension_semantics = [#tpu.dimension_semantics<parallel>], iteration_bounds = array<i64: 3>, scalar_prefetch = 0 : i64, scratch_operands = 0 : i64, tpu.core_type = #tpu.core_type<tc>, window_params = [{transform_indices = @transform_0, window_bounds = array<i64: 4, 128>}, {pipeline_mode = #tpu.pipeline_mode<synchronous>, transform_indices = @transform_1, window_bounds = array<i64: 32, 4>}, {pipeline_mode = #tpu.pipeline_mode<synchronous>, transform_indices = @transform_2, window_bounds = array<i64: 32, 1>}, {pipeline_mode = #tpu.pipeline_mode<synchronous>, transform_indices = @transform_3, window_bounds = array<i64: 32, 32>}, {pipeline_mode = #tpu.pipeline_mode<synchronous>, transform_indices = @transform_4, window_bounds = array<i64: 32, 1>}, {pipeline_mode = #tpu.pipeline_mode<synchronous>, transform_indices = @transform_5, window_bounds = array<i64: 32, 1>}, {pipeline_mode = #tpu.pipeline_mode<synchronous>, transform_indices = @transform_6, window_bounds = array<i64: 1, 1>}, {transform_indices = @transform_7, window_bounds = array<i64: 1, 128>}]} {
    %c0 = arith.constant 0 : index
    %c0_0 = arith.constant 0 : index
    %0 = vector.load %arg1[%c0, %c0_0] : memref<4x128xf32, #tpu.memory_space<vmem>>, vector<4x128xf32>
    %c0_1 = arith.constant 0 : index
    %c0_2 = arith.constant 0 : index
    %1 = vector.load %arg2[%c0_1, %c0_2] : memref<32x4xf32, #tpu.memory_space<vmem>>, vector<32x4xf32>
    %c0_3 = arith.constant 0 : index
    %c0_4 = arith.constant 0 : index
    %2 = vector.load %arg3[%c0_3, %c0_4] : memref<32x1xf32, #tpu.memory_space<vmem>>, vector<32x1xf32>
    %3 = vector.extract_strided_slice %1 {offsets = [0, 0], sizes = [32, 1], strides = [1, 1]} : vector<32x4xf32> to vector<32x1xf32>
    %4 = vector.extract_strided_slice %0 {offsets = [0, 0], sizes = [1, 128], strides = [1, 1]} : vector<4x128xf32> to vector<1x128xf32>
    %5 = vector.broadcast %3 : vector<32x1xf32> to vector<32x128xf32>
    %6 = vector.broadcast %4 : vector<1x128xf32> to vector<32x128xf32>
    %7 = arith.mulf %5, %6 : vector<32x128xf32>
    %8 = vector.broadcast %2 : vector<32x1xf32> to vector<32x128xf32>
    %9 = arith.addf %8, %7 : vector<32x128xf32>
    %10 = vector.extract_strided_slice %1 {offsets = [0, 1], sizes = [32, 1], strides = [1, 1]} : vector<32x4xf32> to vector<32x1xf32>
    %11 = vector.extract_strided_slice %0 {offsets = [1, 0], sizes = [1, 128], strides = [1, 1]} : vector<4x128xf32> to vector<1x128xf32>
    %12 = vector.broadcast %10 : vector<32x1xf32> to vector<32x128xf32>
    %13 = vector.broadcast %11 : vector<1x128xf32> to vector<32x128xf32>
    %14 = arith.mulf %12, %13 : vector<32x128xf32>
    %15 = arith.addf %9, %14 : vector<32x128xf32>
    %16 = vector.extract_strided_slice %1 {offsets = [0, 2], sizes = [32, 1], strides = [1, 1]} : vector<32x4xf32> to vector<32x1xf32>
    %17 = vector.extract_strided_slice %0 {offsets = [2, 0], sizes = [1, 128], strides = [1, 1]} : vector<4x128xf32> to vector<1x128xf32>
    %18 = vector.broadcast %16 : vector<32x1xf32> to vector<32x128xf32>
    %19 = vector.broadcast %17 : vector<1x128xf32> to vector<32x128xf32>
    %20 = arith.mulf %18, %19 : vector<32x128xf32>
    %21 = arith.addf %15, %20 : vector<32x128xf32>
    %22 = vector.extract_strided_slice %1 {offsets = [0, 3], sizes = [32, 1], strides = [1, 1]} : vector<32x4xf32> to vector<32x1xf32>
    %23 = vector.extract_strided_slice %0 {offsets = [3, 0], sizes = [1, 128], strides = [1, 1]} : vector<4x128xf32> to vector<1x128xf32>
    %24 = vector.broadcast %22 : vector<32x1xf32> to vector<32x128xf32>
    %25 = vector.broadcast %23 : vector<1x128xf32> to vector<32x128xf32>
    %26 = arith.mulf %24, %25 : vector<32x128xf32>
    %27 = arith.addf %21, %26 : vector<32x128xf32>
    %cst = arith.constant 0.000000e+00 : f32
    %28 = vector.broadcast %cst : f32 to vector<32x128xf32>
    %29 = arith.maximumf %27, %28 : vector<32x128xf32>
    %c0_5 = arith.constant 0 : index
    %c0_6 = arith.constant 0 : index
    %30 = vector.load %arg4[%c0_5, %c0_6] : memref<32x32xf32, #tpu.memory_space<vmem>>, vector<32x32xf32>
    %cst_7 = arith.constant dense<0.000000e+00> : vector<32x128xf32>
    %31 = tpu.matmul %30, %29, %cst_7 {dimension_numbers = #tpu.dot_dimension_numbers<[1], [0], [0], [1], [0, 0, 1, 1], [], []>} : vector<32x32xf32>, vector<32x128xf32>, vector<32x128xf32> -> vector<32x128xf32>
    %c0_8 = arith.constant 0 : index
    %c0_9 = arith.constant 0 : index
    %32 = vector.load %arg5[%c0_8, %c0_9] : memref<32x1xf32, #tpu.memory_space<vmem>>, vector<32x1xf32>
    %33 = vector.broadcast %32 : vector<32x1xf32> to vector<32x128xf32>
    %34 = arith.addf %31, %33 : vector<32x128xf32>
    %cst_10 = arith.constant 0.000000e+00 : f32
    %35 = vector.broadcast %cst_10 : f32 to vector<32x128xf32>
    %36 = arith.maximumf %34, %35 : vector<32x128xf32>
    %c0_11 = arith.constant 0 : index
    %c0_12 = arith.constant 0 : index
    %37 = vector.load %arg6[%c0_11, %c0_12] : memref<32x1xf32, #tpu.memory_space<vmem>>, vector<32x1xf32>
    %38 = vector.broadcast %37 : vector<32x1xf32> to vector<32x128xf32>
    %39 = arith.mulf %38, %36 : vector<32x128xf32>
    %cst_13 = arith.constant dense<0.000000e+00> : vector<128xf32>
    %40 = vector.multi_reduction <add>, %39, %cst_13 [0] : vector<32x128xf32> to vector<128xf32>
    %41 = vector.shape_cast %40 : vector<128xf32> to vector<1x128xf32>
    %c0_14 = arith.constant 0 : index
    %c0_15 = arith.constant 0 : index
    %42 = vector.load %arg7[%c0_14, %c0_15] : memref<1x1xf32, #tpu.memory_space<vmem>>, vector<1x1xf32>
    %43 = vector.broadcast %42 : vector<1x1xf32> to vector<1x128xf32>
    %44 = arith.addf %41, %43 : vector<1x128xf32>
    %c0_16 = arith.constant 0 : index
    %c0_17 = arith.constant 0 : index
    %45 = vector.load %arg8[%c0_16, %c0_17] : memref<1x128xf32, #tpu.memory_space<vmem>>, vector<1x128xf32>
    tpu.vector_store %arg8[%c0_16, %c0_17], %44 {strides = array<i32>} : memref<1x128xf32, #tpu.memory_space<vmem>>, vector<1x128xf32>,
    return
  }
  func.func @transform_0(%arg0: i32) -> (i32, i32) {
    %c0_i32 = arith.constant 0 : i32
    %c0_i32_0 = arith.constant 0 : i32
    return %c0_i32, %arg0 : i32, i32
  }
  func.func @transform_1(%arg0: i32) -> (i32, i32) {
    %c0_i32 = arith.constant 0 : i32
    %c0_i32_0 = arith.constant 0 : i32
    %c0_i32_1 = arith.constant 0 : i32
    return %c0_i32, %c0_i32_0 : i32, i32
  }
  func.func @transform_2(%arg0: i32) -> (i32, i32) {
    %c0_i32 = arith.constant 0 : i32
    %c0_i32_0 = arith.constant 0 : i32
    %c0_i32_1 = arith.constant 0 : i32
    return %c0_i32, %c0_i32_0 : i32, i32
  }
  func.func @transform_3(%arg0: i32) -> (i32, i32) {
    %c0_i32 = arith.constant 0 : i32
    %c0_i32_0 = arith.constant 0 : i32
    %c0_i32_1 = arith.constant 0 : i32
    return %c0_i32, %c0_i32_0 : i32, i32
  }
  func.func @transform_4(%arg0: i32) -> (i32, i32) {
    %c0_i32 = arith.constant 0 : i32
    %c0_i32_0 = arith.constant 0 : i32
    %c0_i32_1 = arith.constant 0 : i32
    return %c0_i32, %c0_i32_0 : i32, i32
  }
  func.func @transform_5(%arg0: i32) -> (i32, i32) {
    %c0_i32 = arith.constant 0 : i32
    %c0_i32_0 = arith.constant 0 : i32
    %c0_i32_1 = arith.constant 0 : i32
    return %c0_i32, %c0_i32_0 : i32, i32
  }
  func.func @transform_6(%arg0: i32) -> (i32, i32) {
    %c0_i32 = arith.constant 0 : i32
    %c0_i32_0 = arith.constant 0 : i32
    %c0_i32_1 = arith.constant 0 : i32
    return %c0_i32, %c0_i32_0 : i32, i32
  }
  func.func @transform_7(%arg0: i32) -> (i32, i32) {
    %c0_i32 = arith.constant 0 : i32
    %c0_i32_0 = arith.constant 0 : i32
    return %c0_i32, %arg0 : i32, i32
  }
}

</mosaic_0001>

<llo_original>
// kernel: tpu_custom_call.1
$region0: #{tpu_custom_call.1}
  #allocation0 [shape = 'u32[]', space=smem, size = 0x4, offset = 0x4, fixed_abs, tag = 'smem constant byte address 0x4 - core index']
  #allocation1 [shape = 'u32[144,128]{1,0:T(1,128)}', space=vmem, size = 0x12000, scoped, tag = 'internal scratch']
  #allocation2 [shape = 'f32[1,1]{1,0:T(1,128)S(1)}', space=vmem, size = 0x200, scoped, tag = 'scoped memory for tpu_custom_call.1']
  %s0 = inlined_call_operand.vmem [shape: f32[4,384], index: 0, kind: input, shape index: {}]
  %s1 = inlined_call_operand.vmem [shape: f32[32,4], index: 1, kind: input, shape index: {}]
  %s2 = inlined_call_operand.vmem [shape: f32[32,1], index: 2, kind: input, shape index: {}]
  %s3 = inlined_call_operand.vmem [shape: f32[32,32], index: 3, kind: input, shape index: {}]
  %s4 = inlined_call_operand.vmem [shape: f32[32,1], index: 4, kind: input, shape index: {}]
  %s5 = inlined_call_operand.vmem [shape: f32[32,1], index: 5, kind: input, shape index: {}]
  %s6 = inlined_call_operand.<no memory space> [shape: f32[1,1], index: 6, kind: input, shape index: {}]
  %s7 = inlined_call_operand.hbm [shape: f32[1,384], index: 7, kind: output, shape index: {}]
  %s8 = sld [smem:[#allocation0]]
  $region61: #{tpu_custom_call.1} parent=0
    _
  %s10 = ssub.s32 1, %s8
  %s11 = scalar_select 0, %s10, %s8
  %v12 = vstv %s6
  %13 = vst [vmem:[#allocation2] sm:$0x1] %v12
  $region1: #{tpu_custom_call.1} parent=0
    #allocation3 [shape = 'u8[1024]{0}', space=vmem, size = 0x400, scoped, tag = 'output window, operand 0']
    #allocation4 [shape = 's32[2]{0}', space=sflag, size = 0x8, scoped, tag = 'scoped memory for tpu_custom_call.1']
    %14 = vsyncpa [#allocation4], 0
    %s15 = scalar_lea.sflag [#allocation4], 1
    %16 = vsyncpa %s15, 0
    loop: start=0, step=1, limit=5
    $region2: #{tpu_custom_call.1} parent=1 // loop_pre_header
      _
    $region3: #{tpu_custom_call.1} parent=1 // loop_header
      %s18 = sphi 0, %s22
      %p19 = scmp.ge.s32.totalorder %s18, 5
      %s28 = sphi 0, %s30
      %s31 = sphi 0, %s28
      %s32 = sphi 0, %s31
      %s48 = sphi 0, %s32
      %s52 = sphi 0, %s52
      %s54 = sphi 0, %s52
      %s55 = sphi 0, %s54
      %s69 = sphi 0, %s55
      %s73 = sphi 0, %s73
      %s75 = sphi 0, %s73
      %s76 = sphi 0, %s75
      %s90 = sphi 0, %s76
      %s94 = sphi 0, %s94
      %s96 = sphi 0, %s94
      %s97 = sphi 0, %s96
      %s111 = sphi 0, %s97
      %s115 = sphi 0, %s115
      %s117 = sphi 0, %s115
      %s118 = sphi 0, %s117
      %s132 = sphi 0, %s118
      %s136 = sphi 0, %s136
      %s138 = sphi 0, %s136
      %s139 = sphi 0, %s138
      %s153 = sphi 0, %s139
      %s157 = sphi 0, %s157
      %s159 = sphi 0, %s157
      %s160 = sphi 0, %s159
      %s174 = sphi 0, %s160
      %s180 = sphi 0, %s182
      %s183 = sphi 0, %s180
      %s184 = sphi 0, %s183
      %s200 = sphi 0, %s184
    $region4: #{tpu_custom_call.1} parent=1 // loop_header_branch
      %21 = sbr.rel (%p19) target = $region8
    $region5: #{tpu_custom_call.1} parent=1 // loop_body
      %s23 = ssub.s32 %s18, 1
      %s24 = ssub.s32 %s18, 2
      %s25 = sadd.s32 %s18, 1
      %s26 = ssub.s32 %s18, %s25
      %p27 = scmp.eq.s32.totalorder %s26, 0
      %s29 = sadd.s32 %s28, 1
      %s30 = scalar_select %p27, %s28, %s29
      %p33 = pneg %p27
      %p34 = scmp.eq.s32.totalorder %s18, 2
      %p35 = por %p33, %p34
      %p36 = scmp.ne.s32.totalorder %s28, %s31
      %p37 = scmp.eq.s32.totalorder %s18, 0
      %p38 = por %p36, %p37
      %p39 = scmp.ne.s32.totalorder %s28, %s31
      %p40 = scmp.eq.s32.totalorder %s23, 2
      %p41 = por %p39, %p40
      %p42 = scmp.ne.s32.totalorder %s31, %s32
      %p43 = scmp.eq.s32.totalorder %s23, 0
      %p44 = por %p42, %p43
      %p45 = scmp.ne.s32.totalorder %s31, %s32
      %p46 = scmp.eq.s32.totalorder %s24, 2
      %p47 = por %p45, %p46
      %p49 = scmp.ne.s32.totalorder %s32, %s48
      %p50 = scmp.eq.s32.totalorder %s24, 0
      %p51 = por %p49, %p50
      %s53 = sadd.s32 %s52, 1
      %p56 = scmp.eq.s32.totalorder %s18, 2
      %p57 = scmp.ne.s32.totalorder %s52, %s54
      %p58 = scmp.eq.s32.totalorder %s18, 0
      %p59 = por %p57, %p58
      %p60 = scmp.ne.s32.totalorder %s52, %s54
      %p61 = scmp.eq.s32.totalorder %s23, 2
      %p62 = por %p60, %p61
      %p63 = scmp.ne.s32.totalorder %s54, %s55
      %p64 = scmp.eq.s32.totalorder %s23, 0
      %p65 = por %p63, %p64
      %p66 = scmp.ne.s32.totalorder %s54, %s55
      %p67 = scmp.eq.s32.totalorder %s24, 2
      %p68 = por %p66, %p67
      %p70 = scmp.ne.s32.totalorder %s55, %s69
      %p71 = scmp.eq.s32.totalorder %s24, 0
      %p72 = por %p70, %p71
      %s74 = sadd.s32 %s73, 1
      %p77 = scmp.eq.s32.totalorder %s18, 2
      %p78 = scmp.ne.s32.totalorder %s73, %s75
      %p79 = scmp.eq.s32.totalorder %s18, 0
      %p80 = por %p78, %p79
      %p81 = scmp.ne.s32.totalorder %s73, %s75
      %p82 = scmp.eq.s32.totalorder %s23, 2
      %p83 = por %p81, %p82
      %p84 = scmp.ne.s32.totalorder %s75, %s76
      %p85 = scmp.eq.s32.totalorder %s23, 0
      %p86 = por %p84, %p85
      %p87 = scmp.ne.s32.totalorder %s75, %s76
      %p88 = scmp.eq.s32.totalorder %s24, 2
      %p89 = por %p87, %p88
      %p91 = scmp.ne.s32.totalorder %s76, %s90
      %p92 = scmp.eq.s32.totalorder %s24, 0
      %p93 = por %p91, %p92
      %s95 = sadd.s32 %s94, 1
      %p98 = scmp.eq.s32.totalorder %s18, 2
      %p99 = scmp.ne.s32.totalorder %s94, %s96
      %p100 = scmp.eq.s32.totalorder %s18, 0
      %p101 = por %p99, %p100
      %p102 = scmp.ne.s32.totalorder %s94, %s96
      %p103 = scmp.eq.s32.totalorder %s23, 2
      %p104 = por %p102, %p103
      %p105 = scmp.ne.s32.totalorder %s96, %s97
      %p106 = scmp.eq.s32.totalorder %s23, 0
      %p107 = por %p105, %p106
      %p108 = scmp.ne.s32.totalorder %s96, %s97
      %p109 = scmp.eq.s32.totalorder %s24, 2
      %p110 = por %p108, %p109
      %p112 = scmp.ne.s32.totalorder %s97, %s111
      %p113 = scmp.eq.s32.totalorder %s24, 0
      %p114 = por %p112, %p113
      %s116 = sadd.s32 %s115, 1
      %p119 = scmp.eq.s32.totalorder %s18, 2
      %p120 = scmp.ne.s32.totalorder %s115, %s117
      %p121 = scmp.eq.s32.totalorder %s18, 0
      %p122 = por %p120, %p121
      %p123 = scmp.ne.s32.totalorder %s115, %s117
      %p124 = scmp.eq.s32.totalorder %s23, 2
      %p125 = por %p123, %p124
      %p126 = scmp.ne.s32.totalorder %s117, %s118
      %p127 = scmp.eq.s32.totalorder %s23, 0
      %p128 = por %p126, %p127
      %p129 = scmp.ne.s32.totalorder %s117, %s118
      %p130 = scmp.eq.s32.totalorder %s24, 2
      %p131 = por %p129, %p130
      %p133 = scmp.ne.s32.totalorder %s118, %s132
      %p134 = scmp.eq.s32.totalorder %s24, 0
      %p135 = por %p133, %p134
      %s137 = sadd.s32 %s136, 1
      %p140 = scmp.eq.s32.totalorder %s18, 2
      %p141 = scmp.ne.s32.totalorder %s136, %s138
      %p142 = scmp.eq.s32.totalorder %s18, 0
      %p143 = por %p141, %p142
      %p144 = scmp.ne.s32.totalorder %s136, %s138
      %p145 = scmp.eq.s32.totalorder %s23, 2
      %p146 = por %p144, %p145
      %p147 = scmp.ne.s32.totalorder %s138, %s139
      %p148 = scmp.eq.s32.totalorder %s23, 0
      %p149 = por %p147, %p148
      %p150 = scmp.ne.s32.totalorder %s138, %s139
      %p151 = scmp.eq.s32.totalorder %s24, 2
      %p152 = por %p150, %p151
      %p154 = scmp.ne.s32.totalorder %s139, %s153
      %p155 = scmp.eq.s32.totalorder %s24, 0
      %p156 = por %p154, %p155
      %s158 = sadd.s32 %s157, 1
      %p161 = scmp.eq.s32.totalorder %s18, 2
      %p162 = scmp.ne.s32.totalorder %s157, %s159
      %p163 = scmp.eq.s32.totalorder %s18, 0
      %p164 = por %p162, %p163
      %p165 = scmp.ne.s32.totalorder %s157, %s159
      %p166 = scmp.eq.s32.totalorder %s23, 2
      %p167 = por %p165, %p166
      %p168 = scmp.ne.s32.totalorder %s159, %s160
      %p169 = scmp.eq.s32.totalorder %s23, 0
      %p170 = por %p168, %p169
      %p171 = scmp.ne.s32.totalorder %s159, %s160
      %p172 = scmp.eq.s32.totalorder %s24, 2
      %p173 = por %p171, %p172
      %p175 = scmp.ne.s32.totalorder %s160, %s174
      %p176 = scmp.eq.s32.totalorder %s24, 0
      %p177 = por %p175, %p176
      %s178 = ssub.s32 %s18, %s25
      %p179 = scmp.eq.s32.totalorder %s178, 0
      %s181 = sadd.s32 %s180, 1
      %s182 = scalar_select %p179, %s180, %s181
      %p185 = pneg %p179
      %p186 = scmp.eq.s32.totalorder %s18, 2
      %p187 = por %p185, %p186
      %p188 = scmp.ne.s32.totalorder %s180, %s183
      %p189 = scmp.eq.s32.totalorder %s18, 0
      %p190 = por %p188, %p189
      %p191 = scmp.ne.s32.totalorder %s180, %s183
      %p192 = scmp.eq.s32.totalorder %s23, 2
      %p193 = por %p191, %p192
      %p194 = scmp.ne.s32.totalorder %s183, %s184
      %p195 = scmp.eq.s32.totalorder %s23, 0
      %p196 = por %p194, %p195
      %p197 = scmp.ne.s32.totalorder %s183, %s184
      %p198 = scmp.eq.s32.totalorder %s24, 2
      %p199 = por %p197, %p198
      %p201 = scmp.ne.s32.totalorder %s184, %s200
      %p202 = scmp.eq.s32.totalorder %s24, 0
      %p203 = por %p201, %p202
      %p204 = scmp.le.s32.totalorder 1, %s18
      %p205 = scmp.lt.s32.totalorder %s18, 4
      %p206 = pnand %p204, %p205
      %p207 = pneg %p206
      // Predicated region
      $region9: #{tpu_custom_call.1} parent=5 // pred_check
        _
      $region10: #{tpu_custom_call.1} parent=5 // pred_check_branch
        %209 = sbr.rel (%p206) target = $region12
      $region11: #{tpu_custom_call.1} parent=5 // pred_region
        %s210 = ssub.s32 %s18, 1
        // Predicated region
        $region13: #{tpu_custom_call.1} parent=11 // pred_check
          %p211 = pneg %p65
        $region14: #{tpu_custom_call.1} parent=11 // pred_check_branch
          %213 = sbr.rel (%p211) target = $region16
        $region15: #{tpu_custom_call.1} parent=11 // pred_region
          _
        $region16: #{tpu_custom_call.1} parent=11 // pred_fallthru
          _
        // Predicated region
        $region17: #{tpu_custom_call.1} parent=11 // pred_check
          %p214 = pneg %p86
        $region18: #{tpu_custom_call.1} parent=11 // pred_check_branch
          %216 = sbr.rel (%p214) target = $region20
        $region19: #{tpu_custom_call.1} parent=11 // pred_region
          _
        $region20: #{tpu_custom_call.1} parent=11 // pred_fallthru
          _
        // Predicated region
        $region21: #{tpu_custom_call.1} parent=11 // pred_check
          %p217 = pneg %p107
        $region22: #{tpu_custom_call.1} parent=11 // pred_check_branch
          %219 = sbr.rel (%p217) target = $region24
        $region23: #{tpu_custom_call.1} parent=11 // pred_region
          _
        $region24: #{tpu_custom_call.1} parent=11 // pred_fallthru
          _
        // Predicated region
        $region25: #{tpu_custom_call.1} parent=11 // pred_check
          %p220 = pneg %p128
        $region26: #{tpu_custom_call.1} parent=11 // pred_check_branch
          %222 = sbr.rel (%p220) target = $region28
        $region27: #{tpu_custom_call.1} parent=11 // pred_region
          _
        $region28: #{tpu_custom_call.1} parent=11 // pred_fallthru
          _
        // Predicated region
        $region29: #{tpu_custom_call.1} parent=11 // pred_check
          %p223 = pneg %p149
        $region30: #{tpu_custom_call.1} parent=11 // pred_check_branch
          %225 = sbr.rel (%p223) target = $region32
        $region31: #{tpu_custom_call.1} parent=11 // pred_region
          _
        $region32: #{tpu_custom_call.1} parent=11 // pred_fallthru
          _
        // Predicated region
        $region33: #{tpu_custom_call.1} parent=11 // pred_check
          %p226 = pneg %p170
        $region34: #{tpu_custom_call.1} parent=11 // pred_check_branch
          %228 = sbr.rel (%p226) target = $region36
        $region35: #{tpu_custom_call.1} parent=11 // pred_region
          _
        $region36: #{tpu_custom_call.1} parent=11 // pred_fallthru
          _
      $region12: #{tpu_custom_call.1} parent=5 // pred_fallthru
        _
      %p229 = scmp.lt.s32.totalorder %s18, 3
      // Predicated region
      $region37: #{tpu_custom_call.1} parent=5 // pred_check
        %p230 = pneg %p229
      $region38: #{tpu_custom_call.1} parent=5 // pred_check_branch
        %232 = sbr.rel (%p230) target = $region40
      $region39: #{tpu_custom_call.1} parent=5 // pred_region
        // Predicated region
        $region41: #{tpu_custom_call.1} parent=39 // pred_check
          %p233 = pneg %p38
        $region42: #{tpu_custom_call.1} parent=39 // pred_check_branch
          %235 = sbr.rel (%p233) target = $region44
        $region43: #{tpu_custom_call.1} parent=39 // pred_region
          %p236 = scmp.lt.s32.totalorder %s18, 2
          %s237 = scalar_select %p236, %s18, 2
          %s238 = smul.addr %s237, 4
          %s239 = scalar_lea.vmem %s0, %s238
        $region44: #{tpu_custom_call.1} parent=39 // pred_fallthru
          _
      $region40: #{tpu_custom_call.1} parent=5 // pred_fallthru
        _
      %p240 = scmp.le.s32.totalorder 1, %s18
      %p241 = scmp.lt.s32.totalorder %s18, 4
      %p242 = pnand %p240, %p241
      %p243 = pneg %p242
      // Predicated region
      $region45: #{tpu_custom_call.1} parent=5 // pred_check
        _
      $region46: #{tpu_custom_call.1} parent=5 // pred_check_branch
        %245 = sbr.rel (%p242) target = $region48
      $region47: #{tpu_custom_call.1} parent=5 // pred_region
        %s246 = ssub.s32 %s18, 1
        %p247 = scmp.lt.s32.totalorder %s23, 2
        %s248 = scalar_select %p247, %s23, 2
        %s249 = smul.addr %s248, 4
        %s250 = scalar_lea.vmem %s0, %s249
        %p251 = pneg %p44
        %p252 = pneg %p41
        %p253 = pneg %p65
        %p254 = pneg %p62
        %p255 = pneg %p86
        %p256 = pneg %p83
        %p257 = pneg %p107
        %p258 = pneg %p104
        %p259 = pneg %p128
        %p260 = pneg %p125
        %p261 = pneg %p149
        %p262 = pneg %p146
        %p263 = pneg %p170
        %p264 = pneg %p167
        %p265 = pneg %p196
        %p266 = pneg %p193
        %s267 = sand.u32 %s183, 1
        %s268 = scalar_lea.sflag [#allocation4], %s267
        %s269 = sand.u32 %s183, 1
        %s270 = scalar_lea.vmem [#allocation3], %s269
        %p271 = scmp.lt.s32.totalorder %s23, 2
        %s272 = scalar_select %p271, %s23, 2
        %s273 = smul.addr %s272, 4
        %s274 = scalar_lea.vmem %s0, %s273
        %v275 = vld [vmem:[%s274] sm:$0xf]
        %v276 = vld [vmem:[%s1] sm:$0xff]
        %v277 = vld [vmem:[%s1 + $0x8] sm:$0xff]
        %v278 = vld [vmem:[%s1 + $0x10] sm:$0xff]
        %v279 = vld [vmem:[%s1 + $0x18] sm:$0xff]
        %v280 = vld [vmem:[%s2] sm:$0xff]
        %v281 = vld [vmem:[%s2 + $0x8] sm:$0xff]
        %v282 = vld [vmem:[%s2 + $0x10] sm:$0xff]
        %v283 = vld [vmem:[%s2 + $0x18] sm:$0xff]
        %285 = vset.pattern.permute.xlu0 0
        %286 = vperm.xlu0 %285, %v276
        %v287 = vpop.permute.xlu0 %286
        %290 = vset.pattern.permute.xlu0 0
        %291 = vperm.xlu0 %290, %v277
        %v292 = vpop.permute.xlu0 %291
        %295 = vset.pattern.permute.xlu0 0
        %296 = vperm.xlu0 %295, %v278
        %v297 = vpop.permute.xlu0 %296
        %300 = vset.pattern.permute.xlu0 0
        %301 = vperm.xlu0 %300, %v279
        %v302 = vpop.permute.xlu0 %301
        %v304 = vlaneseq
        %v305 = vshrl.u32 %v304, 7
        %v306 = vsub.s32 0, %v305
        %v307 = vrot.slane %v275, %v306
        %v308 = vmul.f32 %v287, %v307
        %v309 = vmul.f32 %v292, %v307
        %v310 = vmul.f32 %v297, %v307
        %v311 = vmul.f32 %v302, %v307
        %313 = vset.pattern.permute.xlu0 0
        %314 = vperm.xlu0 %313, %v280
        %v315 = vpop.permute.xlu0 %314
        %318 = vset.pattern.permute.xlu0 0
        %319 = vperm.xlu0 %318, %v281
        %v320 = vpop.permute.xlu0 %319
        %323 = vset.pattern.permute.xlu0 0
        %324 = vperm.xlu0 %323, %v282
        %v325 = vpop.permute.xlu0 %324
        %328 = vset.pattern.permute.xlu0 0
        %329 = vperm.xlu0 %328, %v283
        %v330 = vpop.permute.xlu0 %329
        %v332 = vadd.f32 %v315, %v308
        %v333 = vadd.f32 %v320, %v309
        %v334 = vadd.f32 %v325, %v310
        %v335 = vadd.f32 %v330, %v311
        %336 = vset.pattern.permute.xlu0 1
        %337 = vperm.xlu0 %336, %v276
        %v338 = vpop.permute.xlu0 %337
        %340 = vset.pattern.permute.xlu0 1
        %341 = vperm.xlu0 %340, %v277
        %v342 = vpop.permute.xlu0 %341
        %344 = vset.pattern.permute.xlu0 1
        %345 = vperm.xlu0 %344, %v278
        %v346 = vpop.permute.xlu0 %345
        %348 = vset.pattern.permute.xlu0 1
        %349 = vperm.xlu0 %348, %v279
        %v350 = vpop.permute.xlu0 %349
        %v352 = vlaneseq
        %v353 = vshrl.u32 %v352, 7
        %v354 = vsub.s32 1, %v353
        %v355 = vrot.slane %v275, %v354
        %v356 = vmul.f32 %v338, %v355
        %v357 = vmul.f32 %v342, %v355
        %v358 = vmul.f32 %v346, %v355
        %v359 = vmul.f32 %v350, %v355
        %v360 = vadd.f32 %v332, %v356
        %v361 = vadd.f32 %v333, %v357
        %v362 = vadd.f32 %v334, %v358
        %v363 = vadd.f32 %v335, %v359
        %364 = vset.pattern.permute.xlu0 2
        %365 = vperm.xlu0 %364, %v276
        %v366 = vpop.permute.xlu0 %365
        %368 = vset.pattern.permute.xlu0 2
        %369 = vperm.xlu0 %368, %v277
        %v370 = vpop.permute.xlu0 %369
        %372 = vset.pattern.permute.xlu0 2
        %373 = vperm.xlu0 %372, %v278
        %v374 = vpop.permute.xlu0 %373
        %376 = vset.pattern.permute.xlu0 2
        %377 = vperm.xlu0 %376, %v279
        %v378 = vpop.permute.xlu0 %377
        %v380 = vlaneseq
        %v381 = vshrl.u32 %v380, 7
        %v382 = vsub.s32 2, %v381
        %v383 = vrot.slane %v275, %v382
        %v384 = vmul.f32 %v366, %v383
        %v385 = vmul.f32 %v370, %v383
        %v386 = vmul.f32 %v374, %v383
        %v387 = vmul.f32 %v378, %v383
        %v388 = vadd.f32 %v360, %v384
        %v389 = vadd.f32 %v361, %v385
        %v390 = vadd.f32 %v362, %v386
        %v391 = vadd.f32 %v363, %v387
        %392 = vset.pattern.permute.xlu0 3
        %393 = vperm.xlu0 %392, %v276
        %v394 = vpop.permute.xlu0 %393
        %396 = vset.pattern.permute.xlu0 3
        %397 = vperm.xlu0 %396, %v277
        %v398 = vpop.permute.xlu0 %397
        %400 = vset.pattern.permute.xlu0 3
        %401 = vperm.xlu0 %400, %v278
        %v402 = vpop.permute.xlu0 %401
        %404 = vset.pattern.permute.xlu0 3
        %405 = vperm.xlu0 %404, %v279
        %v406 = vpop.permute.xlu0 %405
        %v408 = vlaneseq
        %v409 = vshrl.u32 %v408, 7
        %v410 = vsub.s32 3, %v409
        %v411 = vrot.slane %v275, %v410
        %v412 = vmul.f32 %v394, %v411
        %v413 = vmul.f32 %v398, %v411
        %v414 = vmul.f32 %v402, %v411
        %v415 = vmul.f32 %v406, %v411
        %v416 = vadd.f32 %v388, %v412
        %v417 = vadd.f32 %v389, %v413
        %v418 = vadd.f32 %v390, %v414
        %v419 = vadd.f32 %v391, %v415
        %v420 = vmax.f32 %v416, 0.0
        %v421 = vmax.f32 %v417, 0.0
        %v422 = vmax.f32 %v418, 0.0
        %v423 = vmax.f32 %v419, 0.0
        %v424 = vld [vmem:[%s3] sm:$0xff]
        %v425 = vld [vmem:[%s3 + $0x8] sm:$0xff]
        %v426 = vld [vmem:[%s3 + $0x10] sm:$0xff]
        %v427 = vld [vmem:[%s3 + $0x18] sm:$0xff]
        %v428 = vld [vmem:[%s4] sm:$0xff]
        %v429 = vld [vmem:[%s4 + $0x8] sm:$0xff]
        %v430 = vld [vmem:[%s4 + $0x10] sm:$0xff]
        %v431 = vld [vmem:[%s4 + $0x18] sm:$0xff]
        %433 = vset.pattern.permute.xlu0 0
        %434 = vperm.xlu0 %433, %v428
        %v435 = vpop.permute.xlu0 %434
        %438 = vset.pattern.permute.xlu0 0
        %439 = vperm.xlu0 %438, %v429
        %v440 = vpop.permute.xlu0 %439
        %443 = vset.pattern.permute.xlu0 0
        %444 = vperm.xlu0 %443, %v430
        %v445 = vpop.permute.xlu0 %444
        %448 = vset.pattern.permute.xlu0 0
        %449 = vperm.xlu0 %448, %v431
        %v450 = vpop.permute.xlu0 %449
        %vm452 = vcmask 261120
        %v454 = vsel %vm452, %v424, 0
        %v457 = vsel %vm452, %v425, 0
        %v460 = vsel %vm452, %v426, 0
        %v463 = vsel %vm452, %v427, 0
        %465 = vmatprep.subr.mxu0 0.0
        %466 = vmatpush1.msra.mxu0 %v420
        %467 = vmatprep.subr.mxu0 0.0
        %468 = vmatpush1.msra.mxu0 %v421
        %469 = vmatprep.subr.mxu0 0.0
        %470 = vmatpush1.msra.mxu0 %v422
        %471 = vmatprep.subr.mxu0 0.0
        %472 = vmatpush1.msra.mxu0 %v423
        %473 = vmatprep.subr.mxu0 0.0
        %474 = vmatpush1.msra.mxu0 0.0
        %475 = vmatprep.subr.mxu0 0.0
        %476 = vmatpush1.msra.mxu0 0.0
        %477 = vmatprep.subr.mxu0 0.0
        %478 = vmatpush1.msra.mxu0 0.0
        %479 = vmatprep.subr.mxu0 0.0
        %480 = vmatpush1.msra.mxu0 0.0
        %481 = vmatprep.subr.mxu0 0.0
        %482 = vmatpush1.msra.mxu0 0.0
        %483 = vmatprep.subr.mxu0 0.0
        %484 = vmatpush1.msra.mxu0 0.0
        %485 = vmatprep.subr.mxu0 0.0
        %486 = vmatpush1.msra.mxu0 0.0
        %487 = vmatprep.subr.mxu0 0.0
        %488 = vmatpush1.msra.mxu0 0.0
        %489 = vmatprep.subr.mxu0 0.0
        %490 = vmatpush1.msra.mxu0 0.0
        %491 = vmatprep.subr.mxu0 0.0
        %492 = vmatpush1.msra.mxu0 0.0
        %493 = vmatprep.subr.mxu0 0.0
        %494 = vmatpush1.msra.mxu0 0.0
        %495 = vmatprep.subr.mxu0 0.0
        %496 = vmatpush1.msra.mxu0 0.0
        %497 = vmatprep.subr.mxu0 0.0
        %498 = vmatpush1.msra.mxu0 0.0
        %499 = vmatprep.subr.mxu0 0.0
        %500 = vmatpush1.msra.mxu0 0.0
        %501 = vmatprep.subr.mxu0 0.0
        %502 = vmatpush1.msra.mxu0 0.0
        %503 = vmatprep.subr.mxu0 0.0
        %504 = vmatpush1.msra.mxu0 0.0
        %505 = vmatprep.subr.mxu0 0.0
        %506 = vmatpush1.msra.mxu0 0.0
        %507 = vmatprep.subr.mxu0 0.0
        %508 = vmatpush1.msra.mxu0 0.0
        %509 = vmatprep.subr.mxu0 0.0
        %510 = vmatpush1.msra.mxu0 0.0
        %511 = vmatprep.subr.mxu0 0.0
        %512 = vmatpush1.msra.mxu0 0.0
        %513 = vmatprep.subr.mxu0 0.0
        %514 = vmatpush1.msra.mxu0 0.0
        %515 = vmatprep.subr.mxu0 0.0
        %516 = vmatpush1.msra.mxu0 0.0
        %517 = vmatprep.subr.mxu0 0.0
        %518 = vmatpush1.msra.mxu0 0.0
        %519 = vmatprep.subr.mxu0 0.0
        %520 = vmatpush1.msra.mxu0 0.0
        %521 = vmatprep.subr.mxu0 0.0
        %522 = vmatpush1.msra.mxu0 0.0
        %523 = vmatprep.subr.mxu0 0.0
        %524 = vmatpush1.msra.mxu0 0.0
        %525 = vmatprep.subr.mxu0 0.0
        %526 = vmatpush1.msra.mxu0 0.0
        %527 = vmatprep.subr.mxu0 0.0
        %528 = vmatpush1.msra.mxu0 0.0
        %529 = vmatprep.mubr.f32.mxu0 0.0
        %530 = vmatmul.mubr.f32.gmra.mrb[0].mxu0 %v454
        %v531 = vpop.f32.mrb[0].mxu0
        %v532 = vadd.f32 %v435, %v531
        %v533 = vpop.f32.mrb[0].mxu0
        %534 = vmatprep.mubr.f32.mxu0 0.0
        %535 = vmatmul.mubr.f32.gmra.mrb[0].mxu0 %v457
        %v536 = vpop.f32.mrb[0].mxu0
        %v537 = vadd.f32 %v440, %v536
        %v538 = vpop.f32.mrb[0].mxu0
        %539 = vmatprep.mubr.f32.mxu0 0.0
        %540 = vmatmul.mubr.f32.gmra.mrb[0].mxu0 %v460
        %v541 = vpop.f32.mrb[0].mxu0
        %v542 = vadd.f32 %v445, %v541
        %v543 = vpop.f32.mrb[0].mxu0
        %544 = vmatprep.mubr.f32.mxu0 0.0
        %545 = vmatmul.mubr.f32.gmra.mrb[0].mxu0 %v463
        %v546 = vpop.f32.mrb[0].mxu0
        %v547 = vadd.f32 %v450, %v546
        %v548 = vpop.f32.mrb[0].mxu0
        %549 = vdwg.mxu0
        %v550 = vmax.f32 %v532, 0.0
        %v551 = vmax.f32 %v537, 0.0
        %v552 = vmax.f32 %v542, 0.0
        %v553 = vmax.f32 %v547, 0.0
        %v554 = vld [vmem:[%s5] sm:$0xff]
        %v555 = vld [vmem:[%s5 + $0x8] sm:$0xff]
        %v556 = vld [vmem:[%s5 + $0x10] sm:$0xff]
        %v557 = vld [vmem:[%s5 + $0x18] sm:$0xff]
        %559 = vset.pattern.permute.xlu0 0
        %560 = vperm.xlu0 %559, %v554
        %v561 = vpop.permute.xlu0 %560
        %564 = vset.pattern.permute.xlu0 0
        %565 = vperm.xlu0 %564, %v555
        %v566 = vpop.permute.xlu0 %565
        %569 = vset.pattern.permute.xlu0 0
        %570 = vperm.xlu0 %569, %v556
        %v571 = vpop.permute.xlu0 %570
        %574 = vset.pattern.permute.xlu0 0
        %575 = vperm.xlu0 %574, %v557
        %v576 = vpop.permute.xlu0 %575
        %v578 = vmul.f32 %v561, %v550
        %v579 = vmul.f32 %v566, %v551
        %v580 = vmul.f32 %v571, %v552
        %v581 = vmul.f32 %v576, %v553
        %v582 = vadd.f32 %v578, %v579
        %v583 = vadd.f32 %v582, %v580
        %v584 = vadd.f32 %v583, %v581
        %v585 = vrot.slane %v584, 4
        %v586 = vadd.f32 %v584, %v585
        %v587 = vrot.slane %v586, 2
        %v588 = vadd.f32 %v586, %v587
        %v589 = vrot.slane %v588, 1
        %v590 = vadd.f32 %v588, %v589
        %v591 = vld [vmem:[#allocation2] sm:$0x1]
        %593 = vset.pattern.permute.xlu0 0
        %594 = vperm.xlu0 %593, %v591
        %v595 = vpop.permute.xlu0 %594
        %v597 = vlaneseq
        %v598 = vshrl.u32 %v597, 7
        %v599 = vsub.s32 0, %v598
        %v600 = vrot.slane %v595, %v599
        %v601 = vadd.f32 %v590, %v600
        %602 = vst [vmem:[%s270] sm:$0x1] %v601
        %s603 = sand.u32 %s183, 1
        %s604 = scalar_lea.sflag [#allocation4], %s603
        %s605 = sand.u32 %s183, 1
        %s606 = scalar_lea.vmem [#allocation3], %s605
        // Predicated region
        $region49: #{tpu_custom_call.1} parent=47 // pred_check
          %p607 = pneg %p193
        $region50: #{tpu_custom_call.1} parent=47 // pred_check_branch
          %609 = sbr.rel (%p607) target = $region52
        $region51: #{tpu_custom_call.1} parent=47 // pred_region
          %s611 = ssub.s32 16, 16
          %612 = vsyncadd %s604, %s611
          %s613 = smul.addr %s23, 16
          %s614 = scalar_lea.hbm %s7, %s613
          %s616 = sshll.u32 %s606, 4
          %s617 = int_to_ptr.vmem [resolvable:$true] %s616
          %619 = dma.vmem_to_hbm [thread:$0]  %s617, 16, %s614, %s604
        $region52: #{tpu_custom_call.1} parent=47 // pred_fallthru
          _
      $region48: #{tpu_custom_call.1} parent=5 // pred_fallthru
        _
      %p620 = scmp.le.s32.totalorder 2, %s18
      // Predicated region
      $region53: #{tpu_custom_call.1} parent=5 // pred_check
        %p621 = pneg %p620
      $region54: #{tpu_custom_call.1} parent=5 // pred_check_branch
        %623 = sbr.rel (%p621) target = $region56
      $region55: #{tpu_custom_call.1} parent=5 // pred_region
        %s624 = ssub.s32 %s18, 2
        // Predicated region
        $region57: #{tpu_custom_call.1} parent=55 // pred_check
          %p625 = pneg %p199
        $region58: #{tpu_custom_call.1} parent=55 // pred_check_branch
          %627 = sbr.rel (%p625) target = $region60
        $region59: #{tpu_custom_call.1} parent=55 // pred_region
          %s628 = sand.u32 %s184, 1
          %s629 = scalar_lea.sflag [#allocation4], %s628
          %s630 = sand.u32 %s184, 1
          %s631 = scalar_lea.vmem [#allocation3], %s630
          %632 = dma.done %s629, 16
        $region60: #{tpu_custom_call.1} parent=55 // pred_fallthru
          _
      $region56: #{tpu_custom_call.1} parent=5 // pred_fallthru
        _
    $region6: #{tpu_custom_call.1} parent=1 // loop_footer
      %s22 = sadd.s32 1, %s18
    $region7: #{tpu_custom_call.1} parent=1 // loop_footer_branch
      %17 = sbr.rel target = $region3
    $region8: #{tpu_custom_call.1} parent=1 // loop_exit
      _
    %633 = vsyncpa [#allocation4], 1
    %s634 = scalar_lea.sflag [#allocation4], 1
    %635 = vsyncpa %s634, 1

</llo_original>
